<compile_context>
chip_gen: v5e
topology: v5e:2x2
jax: 0.10.0
libtpu: 0.0.40
codegen_flags: <defaults>
</compile_context>

<pallas_src>
import functools

import jax
import jax.numpy as jnp
from jax.experimental import pallas as pl
from jax.experimental.pallas import tpu as pltpu

ALPHA = 0.25
GAMMA = 2.0                 # hard-wired as an explicit square below
LANES = 128
SUBLANES = 8
DEFAULT_TILE_ROWS = 2048    # (2048, 128) f32 = 1 MiB per input block
MAX_TILE_ROWS = 4096        # keep 2x2x block <= 8 MiB (v5e default scoped VMEM)


def _focal_sum_kernel(x_ref, t_ref, out_ref, acc_ref, *, n_true):
    """One (block_rows, 128) tile: focal-loss partial sum into SMEM acc.

    Grid is (num_cores, steps_per_core): the leading "parallel" axis shards the
    row range across TensorCores; the trailing "arbitrary" axis streams blocks
    through the per-core SMEM accumulator.
    """
    c = pl.program_id(0)
    i = pl.program_id(1)
    steps = pl.num_programs(1)

    @pl.when(i == 0)
    def _init():
        acc_ref[0] = jnp.float32(0.0)

    x = x_ref[...]
    t = t_ref[...]

    # Numerically stable binary_cross_entropy_with_logits (reduction='none'):
    #   bce = max(x, 0) - x*t + log(1 + exp(-|x|))
    bce = jnp.maximum(x, 0.0) - x * t + jnp.log1p(jnp.exp(-jnp.abs(x)))

    # pt built from raw logits, exactly as the PyTorch module ("probs = logits").
    pt = x * t + (1.0 - x) * (1.0 - t)
    z = 1.0 - pt
    contrib = (z * z) * bce          # gamma == 2 -> explicit square (VPU only)

    rows, lanes = x.shape
    block_elems = rows * lanes
    start = (c * steps + i) * block_elems        # global flat offset of block

    # Common path: block fully inside the true element range -> plain sum.
    @pl.when(start + block_elems <= n_true)
    def _full_block():
        acc_ref[0] += jnp.sum(contrib)

    # Tail path: block overhangs n_true (zero-padding and/or garbage from a
    # ragged last block) -> mask by global flat index before summing.
    @pl.when(start + block_elems > n_true)
    def _ragged_block():
        row_ids = jax.lax.broadcasted_iota(jnp.int32, (rows, lanes), 0)
        lane_ids = jax.lax.broadcasted_iota(jnp.int32, (rows, lanes), 1)
        gidx = start + row_ids * lanes + lane_ids
        acc_ref[0] += jnp.sum(jnp.where(gidx < n_true, contrib, 0.0))

    @pl.when(i == steps - 1)
    def _finalize():
        # Fold alpha and the mean's 1/N into one scalar factor; broadcast the
        # per-core partial into this core's (1, 8, 128) output block.
        scaled = acc_ref[0] * jnp.float32(ALPHA / max(n_true, 1))
        out_ref[...] = jnp.full(out_ref.shape, scaled, dtype=jnp.float32)


def binary_focal_loss(logits, targets, *, tile_rows=DEFAULT_TILE_ROWS):
    """Mean binary focal loss; logits/targets shape (B, 1) (any shape works)."""
    assert logits.shape == targets.shape
    n_true = int(logits.size)                      # static
    if n_true == 0:
        return jnp.float32(0.0)

    x = logits.reshape(-1)
    t = targets.reshape(-1)
    if x.dtype != jnp.float32:
        x = x.astype(jnp.float32)
    if t.dtype != jnp.float32:
        t = t.astype(jnp.float32)

    # Lane-dense layout: view the flat vector as (padded_rows, 128).  Pad only
    # to a multiple of 1024 elements (8x128) so B % 1024 == 0 needs no copy.
    rows = pl.cdiv(n_true, LANES)
    padded_rows = pl.cdiv(rows, SUBLANES) * SUBLANES
    padded = padded_rows * LANES
    if padded != n_true:
        x = jnp.pad(x, (0, padded - n_true))
        t = jnp.pad(t, (0, padded - n_true))
    x2 = x.reshape(padded_rows, LANES)
    t2 = t.reshape(padded_rows, LANES)

    # Block sizing: biggest block up to ~1 MiB; if the resulting block count is
    # odd (>1), grow blocks slightly so the count is even and can be split 2-way
    # across TensorCores (v7x) without redundant work.
    tile_rows = max(SUBLANES, (int(tile_rows) // SUBLANES) * SUBLANES)
    block_rows = min(tile_rows, padded_rows)
    num_blocks = pl.cdiv(padded_rows, block_rows)
    if num_blocks > 1 and num_blocks % 2 == 1:
        adj = pl.cdiv(padded_rows, num_blocks - 1)
        adj = pl.cdiv(adj, SUBLANES) * SUBLANES
        block_rows = min(MAX_TILE_ROWS, adj)
        num_blocks = pl.cdiv(padded_rows, block_rows)
    if num_blocks >= 2 and num_blocks % 2 == 0:
        num_cores, steps = 2, num_blocks // 2      # 2-TC split (v7x); serial on 1-TC
    else:
        num_cores, steps = 1, num_blocks

    kernel = functools.partial(_focal_sum_kernel, n_true=n_true)

    out = pl.pallas_call(
        kernel,
        out_shape=jax.ShapeDtypeStruct((num_cores, SUBLANES, LANES), jnp.float32),
        grid=(num_cores, steps),
        in_specs=[
            pl.BlockSpec((block_rows, LANES), lambda c, i: (c * steps + i, 0)),
            pl.BlockSpec((block_rows, LANES), lambda c, i: (c * steps + i, 0)),
        ],
        out_specs=pl.BlockSpec((1, SUBLANES, LANES), lambda c, i: (c, 0, 0)),
        scratch_shapes=[pltpu.SMEM((1,), jnp.float32)],
        compiler_params=pltpu.CompilerParams(
            dimension_semantics=("parallel", "arbitrary"),
        ),
        cost_estimate=pl.CostEstimate(
            flops=12 * n_true,
            transcendentals=2 * n_true,
            bytes_accessed=8 * n_true,
        ),
    )(x2, t2)

    # Each core's partial is already scaled by alpha/N; sum the per-core slots.
    return jnp.sum(out[:, 0, 0])


def _reference(logits, targets, alpha=ALPHA):
    """Pure-JAX mirror of the PyTorch module (gamma=2, reduction='mean')."""
    x = logits.astype(jnp.float32)
    t = targets.astype(jnp.float32)
    bce = jnp.maximum(x, 0.0) - x * t + jnp.log1p(jnp.exp(-jnp.abs(x)))
    pt = x * t + (1.0 - x) * (1.0 - t)
    return jnp.mean(alpha * (1.0 - pt) ** 2 * bce)


if __name__ == "__main__":
    key = jax.random.PRNGKey(0)
    ks = jax.random.split(key, 6)

    # Case 1: the module's nominal (batch_size, 1) shape, tiny batch.
    b1 = 8
    logits1 = jax.random.normal(ks[0], (b1, 1), dtype=jnp.float32)
    targets1 = (jax.random.uniform(ks[1], (b1, 1)) > 0.5).astype(jnp.float32)
    loss1 = binary_focal_loss(logits1, targets1)
    jax.block_until_ready(loss1)
    ref1 = _reference(logits1, targets1)
    assert jnp.allclose(loss1, ref1, atol=1e-6, rtol=1e-5), (loss1, ref1)

    # Case 2: B % 1024 == 0 -> no wrapper pad copy, single block.
    b2 = 8192
    logits2 = jax.random.normal(ks[2], (b2, 1), dtype=jnp.float32)
    targets2 = (jax.random.uniform(ks[3], (b2, 1)) > 0.5).astype(jnp.float32)
    loss2 = binary_focal_loss(logits2, targets2)
    jax.block_until_ready(loss2)
    ref2 = _reference(logits2, targets2)
    assert jnp.allclose(loss2, ref2, atol=1e-6, rtol=1e-5), (loss2, ref2)

    # Case 3: large batch -> even block split, 2-way parallel core axis,
    # padded + masked tail block.
    b3 = 600_000
    logits3 = jax.random.normal(ks[4], (b3, 1), dtype=jnp.float32)
    targets3 = (jax.random.uniform(ks[5], (b3, 1)) > 0.5).astype(jnp.float32)
    loss3 = binary_focal_loss(logits3, targets3)
    jax.block_until_ready(loss3)
    ref3 = _reference(logits3, targets3)
    assert jnp.allclose(loss3, ref3, atol=1e-5, rtol=1e-4), (loss3, ref3)

    print("KERNEL_OK")
</pallas_src>

<mosaic_0001>
module attributes {stable_mosaic.version = 11 : i64} {
  func.func @_focal_sum_kernel(%arg0: i32, %arg1: i32, %arg2: memref<8x128xf32, #tpu.memory_space<vmem>>, %arg3: memref<8x128xf32, #tpu.memory_space<vmem>>, %arg4: memref<1x8x128xf32, #tpu.memory_space<vmem>>, %arg5: memref<1xf32, #tpu.memory_space<smem>>) attributes {dimension_semantics = [#tpu.dimension_semantics<parallel>, #tpu.dimension_semantics<arbitrary>], iteration_bounds = array<i64: 1, 1>, scalar_prefetch = 0 : i64, scratch_operands = 1 : i64, tpu.core_type = #tpu.core_type<tc>, window_params = [{transform_indices = @transform_0, window_bounds = array<i64: 8, 128>}, {transform_indices = @transform_1, window_bounds = array<i64: 8, 128>}, {transform_indices = @transform_2, window_bounds = array<i64: 1, 8, 128>}]} {
    %c0_i32 = arith.constant 0 : i32
    %0 = arith.cmpi eq, %arg1, %c0_i32 : i32
    %1 = arith.extui %0 : i1 to i32
    %c0_i32_0 = arith.constant 0 : i32
    %2 = arith.cmpi ne, %1, %c0_i32_0 : i32
    scf.if %2 {
      %cst_15 = arith.constant 0.000000e+00 : f32
      %c0_16 = arith.constant 0 : index
      %40 = memref.load %arg5[%c0_16] : memref<1xf32, #tpu.memory_space<smem>>
      memref.store %cst_15, %arg5[%c0_16] : memref<1xf32, #tpu.memory_space<smem>>
    } else {
    }
    %c0 = arith.constant 0 : index
    %c0_1 = arith.constant 0 : index
    %3 = vector.load %arg2[%c0, %c0_1] : memref<8x128xf32, #tpu.memory_space<vmem>>, vector<8x128xf32>
    %c0_2 = arith.constant 0 : index
    %c0_3 = arith.constant 0 : index
    %4 = vector.load %arg3[%c0_2, %c0_3] : memref<8x128xf32, #tpu.memory_space<vmem>>, vector<8x128xf32>
    %cst = arith.constant 0.000000e+00 : f32
    %5 = vector.broadcast %cst : f32 to vector<8x128xf32>
    %6 = arith.maximumf %3, %5 : vector<8x128xf32>
    %7 = arith.mulf %3, %4 : vector<8x128xf32>
    %8 = arith.subf %6, %7 : vector<8x128xf32>
    %9 = math.absf %3 : vector<8x128xf32>
    %cst_4 = arith.constant 0.000000e+00 : f32
    %10 = vector.broadcast %cst_4 : f32 to vector<8x128xf32>
    %11 = arith.subf %10, %9 : vector<8x128xf32>
    %12 = math.exp %11 : vector<8x128xf32>
    %13 = math.log1p %12 : vector<8x128xf32>
    %14 = arith.addf %8, %13 : vector<8x128xf32>
    %15 = arith.mulf %3, %4 : vector<8x128xf32>
    %cst_5 = arith.constant 1.000000e+00 : f32
    %16 = vector.broadcast %cst_5 : f32 to vector<8x128xf32>
    %17 = arith.subf %16, %3 : vector<8x128xf32>
    %cst_6 = arith.constant 1.000000e+00 : f32
    %18 = vector.broadcast %cst_6 : f32 to vector<8x128xf32>
    %19 = arith.subf %18, %4 : vector<8x128xf32>
    %20 = arith.mulf %17, %19 : vector<8x128xf32>
    %21 = arith.addf %15, %20 : vector<8x128xf32>
    %cst_7 = arith.constant 1.000000e+00 : f32
    %22 = vector.broadcast %cst_7 : f32 to vector<8x128xf32>
    %23 = arith.subf %22, %21 : vector<8x128xf32>
    %24 = arith.mulf %23, %23 : vector<8x128xf32>
    %25 = arith.mulf %24, %14 : vector<8x128xf32>
    %c1_i32 = arith.constant 1 : i32
    %26 = arith.muli %arg0, %c1_i32 : i32
    %27 = arith.addi %26, %arg1 : i32
    %c1024_i32 = arith.constant 1024 : i32
    %28 = arith.muli %27, %c1024_i32 : i32
    %c1024_i32_8 = arith.constant 1024 : i32
    %29 = arith.addi %28, %c1024_i32_8 : i32
    %c8_i32 = arith.constant 8 : i32
    %30 = arith.cmpi sle, %29, %c8_i32 : i32
    %31 = arith.extui %30 : i1 to i32
    %c0_i32_9 = arith.constant 0 : i32
    %32 = arith.cmpi ne, %31, %c0_i32_9 : i32
    scf.if %32 {
      %c0_15 = arith.constant 0 : index
      %40 = memref.load %arg5[%c0_15] : memref<1xf32, #tpu.memory_space<smem>>
      %41 = vector.shape_cast %25 : vector<8x128xf32> to vector<1x8x128xf32>
      %cst_16 = arith.constant dense<0.000000e+00> : vector<1xf32>
      %42 = vector.multi_reduction <add>, %41, %cst_16 [1, 2] : vector<1x8x128xf32> to vector<1xf32>
      %43 = vector.shape_cast %42 : vector<1xf32> to vector<1x1x1xf32>
      %44 = vector.extract %43[0, 0, 0] : f32 from vector<1x1x1xf32>
      %45 = arith.addf %40, %44 : f32
      %c0_17 = arith.constant 0 : index
      %46 = memref.load %arg5[%c0_17] : memref<1xf32, #tpu.memory_space<smem>>
      memref.store %45, %arg5[%c0_17] : memref<1xf32, #tpu.memory_space<smem>>
    } else {
    }
    %c1024_i32_10 = arith.constant 1024 : i32
    %33 = arith.addi %28, %c1024_i32_10 : i32
    %c8_i32_11 = arith.constant 8 : i32
    %34 = arith.cmpi sgt, %33, %c8_i32_11 : i32
    %35 = arith.extui %34 : i1 to i32
    %c0_i32_12 = arith.constant 0 : i32
    %36 = arith.cmpi ne, %35, %c0_i32_12 : i32
    scf.if %36 {
      %40 = tpu.iota {dimensions = array<i32: 0>} : vector<8x128xi32>
      %41 = tpu.iota {dimensions = array<i32: 1>} : vector<8x128xi32>
      %c128_i32 = arith.constant 128 : i32
      %42 = vector.broadcast %c128_i32 : i32 to vector<8x128xi32>
      %43 = arith.muli %40, %42 : vector<8x128xi32>
      %44 = vector.broadcast %28 : i32 to vector<8x128xi32>
      %45 = arith.addi %44, %43 : vector<8x128xi32>
      %46 = arith.addi %45, %41 : vector<8x128xi32>
      %c0_15 = arith.constant 0 : index
      %47 = memref.load %arg5[%c0_15] : memref<1xf32, #tpu.memory_space<smem>>
      %c8_i32_16 = arith.constant 8 : i32
      %48 = vector.broadcast %c8_i32_16 : i32 to vector<8x128xi32>
      %49 = arith.cmpi slt, %46, %48 : vector<8x128xi32>
      %cst_17 = arith.constant 0.000000e+00 : f32
      %50 = vector.broadcast %cst_17 : f32 to vector<8x128xf32>
      %51 = arith.select %49, %25, %50 : vector<8x128xi1>, vector<8x128xf32>
      %52 = vector.shape_cast %51 : vector<8x128xf32> to vector<1x8x128xf32>
      %cst_18 = arith.constant dense<0.000000e+00> : vector<1xf32>
      %53 = vector.multi_reduction <add>, %52, %cst_18 [1, 2] : vector<1x8x128xf32> to vector<1xf32>
      %54 = vector.shape_cast %53 : vector<1xf32> to vector<1x1x1xf32>
      %55 = vector.extract %54[0, 0, 0] : f32 from vector<1x1x1xf32>
      %56 = arith.addf %47, %55 : f32
      %c0_19 = arith.constant 0 : index
      %57 = memref.load %arg5[%c0_19] : memref<1xf32, #tpu.memory_space<smem>>
      memref.store %56, %arg5[%c0_19] : memref<1xf32, #tpu.memory_space<smem>>
    } else {
    }
    %c0_i32_13 = arith.constant 0 : i32
    %37 = arith.cmpi eq, %arg1, %c0_i32_13 : i32
    %38 = arith.extui %37 : i1 to i32
    %c0_i32_14 = arith.constant 0 : i32
    %39 = arith.cmpi ne, %38, %c0_i32_14 : i32
    scf.if %39 {
      %c0_15 = arith.constant 0 : index
      %40 = memref.load %arg5[%c0_15] : memref<1xf32, #tpu.memory_space<smem>>
      %cst_16 = arith.constant 3.125000e-02 : f32
      %41 = arith.mulf %40, %cst_16 : f32
      %42 = vector.broadcast %41 : f32 to vector<1x8x128xf32>
      %c0_17 = arith.constant 0 : index
      %c0_18 = arith.constant 0 : index
      %c0_19 = arith.constant 0 : index
      %43 = vector.load %arg4[%c0_17, %c0_18, %c0_19] : memref<1x8x128xf32, #tpu.memory_space<vmem>>, vector<1x8x128xf32>
      tpu.vector_store %arg4[%c0_17, %c0_18, %c0_19], %42 {strides = array<i32>} : memref<1x8x128xf32, #tpu.memory_space<vmem>>, vector<1x8x128xf32>,
    } else {
    }
    return
  }
  func.func @transform_0(%arg0: i32, %arg1: i32) -> (i32, i32) {
    %c1_i32 = arith.constant 1 : i32
    %0 = arith.muli %arg0, %c1_i32 : i32
    %1 = arith.addi %0, %arg1 : i32
    %c0_i32 = arith.constant 0 : i32
    %c0_i32_0 = arith.constant 0 : i32
    return %1, %c0_i32 : i32, i32
  }
  func.func @transform_1(%arg0: i32, %arg1: i32) -> (i32, i32) {
    %c1_i32 = arith.constant 1 : i32
    %0 = arith.muli %arg0, %c1_i32 : i32
    %1 = arith.addi %0, %arg1 : i32
    %c0_i32 = arith.constant 0 : i32
    %c0_i32_0 = arith.constant 0 : i32
    return %1, %c0_i32 : i32, i32
  }
  func.func @transform_2(%arg0: i32, %arg1: i32) -> (i32, i32, i32) {
    %c0_i32 = arith.constant 0 : i32
    %c0_i32_0 = arith.constant 0 : i32
    %c0_i32_1 = arith.constant 0 : i32
    return %arg0, %c0_i32, %c0_i32_0 : i32, i32, i32
  }
}

</mosaic_0001>

<llo_original>
// kernel: tpu_custom_call.1
$region0: #{tpu_custom_call.1}
  #allocation0 [shape = 'u32[]', space=smem, size = 0x4, offset = 0x4, fixed_abs, tag = 'smem constant byte address 0x4 - core index']
  #allocation1 [shape = 'u32[72,128]{1,0:T(1,128)}', space=vmem, size = 0x9000, scoped, tag = 'internal scratch']
  #allocation2 [shape = 'f32[1]{0:T(128)}', space=smem, size = 0x200, scoped, tag = 'scratch operand']
  %s0 = inlined_call_operand.hbm [shape: f32[8,128], index: 0, kind: input, shape index: {}]
  %s1 = inlined_call_operand.hbm [shape: f32[8,128], index: 1, kind: input, shape index: {}]
  %s2 = inlined_call_operand.hbm [shape: f32[1,8,128], index: 2, kind: output, shape index: {}]
  %s3 = sld [smem:[#allocation0]]
  $region42: #{tpu_custom_call.1} parent=0
    _
  %s5 = ssub.s32 1, %s3
  %s6 = scalar_select 0, %s5, %s3
  $region1: #{tpu_custom_call.1} parent=0
    #allocation3 [shape = 'u8[4096]{0}', space=vmem, size = 0x1000, scoped, tag = 'input window, operand 0, single buffered']
    #allocation4 [shape = 's32[1]{0}', space=sflag, size = 0x4, scoped, tag = 'scoped memory for tpu_custom_call.1']
    #allocation5 [shape = 's32[1]{0}', space=sflag, size = 0x4, scoped, tag = 'scoped memory for tpu_custom_call.1']
    #allocation6 [shape = 'u8[4096]{0}', space=vmem, size = 0x1000, scoped, tag = 'input window, operand 1, single buffered']
    #allocation7 [shape = 's32[1]{0}', space=sflag, size = 0x4, scoped, tag = 'scoped memory for tpu_custom_call.1']
    #allocation8 [shape = 'u8[4096]{0}', space=vmem, size = 0x1000, scoped, tag = 'output window, operand 0, single buffered']
    %7 = vsyncpa [#allocation4], 0
    %8 = vsyncpa [#allocation7], 0
    %9 = vsyncpa [#allocation5], 0
    // Predicated region
    $region2: #{tpu_custom_call.1} parent=1 // pred_check
      _
    $region3: #{tpu_custom_call.1} parent=1 // pred_check_branch
      %11 = sbr.rel (0) target = $region5
    $region4: #{tpu_custom_call.1} parent=1 // pred_region
      %s12 = sadd.s32 0, 0
      %14 = vsyncadd [#allocation4], 0
      %s15 = smul.addr %s12, 8
      %s16 = scalar_lea.hbm %s0, %s15
      %s18 = sshll.u32 %s16, 4
      %s19 = int_to_ptr.hbm [resolvable:$true] %s18
      %s20 = sshll.u32 [#allocation3], 4
      %s21 = int_to_ptr.vmem [resolvable:$true] %s20
      %23 = dma.hbm_to_vmem [thread:$0]  %s19, 128, %s21, [#allocation4]
    $region5: #{tpu_custom_call.1} parent=1 // pred_fallthru
      _
    // Predicated region
    $region6: #{tpu_custom_call.1} parent=1 // pred_check
      _
    $region7: #{tpu_custom_call.1} parent=1 // pred_check_branch
      %25 = sbr.rel (0) target = $region9
    $region8: #{tpu_custom_call.1} parent=1 // pred_region
      %s26 = sadd.s32 0, 0
      %28 = vsyncadd [#allocation7], 0
      %s29 = smul.addr %s26, 8
      %s30 = scalar_lea.hbm %s1, %s29
      %s32 = sshll.u32 %s30, 4
      %s33 = int_to_ptr.hbm [resolvable:$true] %s32
      %s34 = sshll.u32 [#allocation6], 4
      %s35 = int_to_ptr.vmem [resolvable:$true] %s34
      %37 = dma.hbm_to_vmem [thread:$0]  %s33, 128, %s35, [#allocation7]
    $region9: #{tpu_custom_call.1} parent=1 // pred_fallthru
      _
    // Predicated region
    $region10: #{tpu_custom_call.1} parent=1 // pred_check
      _
    $region11: #{tpu_custom_call.1} parent=1 // pred_check_branch
      %39 = sbr.rel (0) target = $region13
    $region12: #{tpu_custom_call.1} parent=1 // pred_region
      %41 = dma.done [#allocation4], 128
    $region13: #{tpu_custom_call.1} parent=1 // pred_fallthru
      _
    // Predicated region
    $region14: #{tpu_custom_call.1} parent=1 // pred_check
      _
    $region15: #{tpu_custom_call.1} parent=1 // pred_check_branch
      %43 = sbr.rel (0) target = $region17
    $region16: #{tpu_custom_call.1} parent=1 // pred_region
      %45 = dma.done [#allocation7], 128
    $region17: #{tpu_custom_call.1} parent=1 // pred_fallthru
      _
    %s46 = sadd.s32 0, 0
    %s47 = sadd.s32 0, 0
    %p48 = scmp.eq.s32.totalorder 0, 0
    // Predicated region
    $region18: #{tpu_custom_call.1} parent=1 // pred_check
      %p49 = pneg %p48
    $region19: #{tpu_custom_call.1} parent=1 // pred_check_branch
      %51 = sbr.rel (%p49) target = $region21
    $region20: #{tpu_custom_call.1} parent=1 // pred_region
      %s52 = scalar_lea.smem [#allocation2], 0
      %53 = sst [smem:[%s52]] 0.0
    $region21: #{tpu_custom_call.1} parent=1 // pred_fallthru
      _
    %v54 = vld [vmem:[#allocation3] sm:$0xff]
    %v55 = vld [vmem:[#allocation6] sm:$0xff]
    %v56 = vmax.f32 %v54, 0.0
    %v57 = vmul.f32 %v54, %v55
    %v58 = vsub.f32 %v56, %v57
    %v59 = vand.u32 2147483647, %v54
    %v60 = vsub.f32 0.0, %v59
    %v61 = vmul.f32 %v60, 1.442695
    %v62 = vpow.pop %v61
    %v63 = vadd.f32 %v62, 1.0
    %v64 = vlog2.pop %v63
    %v65 = vmul.f32 %v64, 0.6931472
    %v66 = vmul.f32 -0.5, %v62
    %v67 = vadd.f32 %v66, 1.0
    %v68 = vmul.f32 %v67, %v62
    %v69 = vand.u32 2147483647, %v62
    %vm70 = vcmp.lt.f32.partialorder %v69, 0.0004427343
    %v71 = vsel %vm70, %v68, %v65
    %v72 = vadd.f32 %v58, %v71
    %v73 = vsub.f32 1.0, %v54
    %v74 = vsub.f32 1.0, %v55
    %v75 = vmul.f32 %v73, %v74
    %v76 = vadd.f32 %v57, %v75
    %v77 = vsub.f32 1.0, %v76
    %v78 = vmul.f32 %v77, %v77
    %v79 = vmul.f32 %v78, %v72
    %s80 = sadd.s32 0, 0
    %s81 = smul.u32 %s80, 1024
    %s82 = sadd.s32 %s81, 1024
    %p83 = scmp.le.s32.totalorder %s82, 8
    // Predicated region
    $region22: #{tpu_custom_call.1} parent=1 // pred_check
      %p84 = pneg %p83
    $region23: #{tpu_custom_call.1} parent=1 // pred_check_branch
      %86 = sbr.rel (%p84) target = $region25
    $region24: #{tpu_custom_call.1} parent=1 // pred_region
      %s87 = sld [smem:[#allocation2]]
      %88 = vadd.xlane.f32.xlu0 %v79
      %v89 = vpop.xlane.xlu0 %88
      %v90 = vrot.slane %v89, 4
      %v91 = vadd.f32 %v89, %v90
      %v92 = vrot.slane %v91, 2
      %v93 = vadd.f32 %v91, %v92
      %v94 = vrot.slane %v93, 1
      %v95 = vadd.f32 %v93, %v94
      %s96 = vtos %v95
      %s97 = sadd.f32 %s87, %s96
      %s98 = scalar_lea.smem [#allocation2], 0
      %99 = sst [smem:[%s98]] %s97
    $region25: #{tpu_custom_call.1} parent=1 // pred_fallthru
      _
    %p100 = scmp.gt.s32.totalorder %s82, 8
    // Predicated region
    $region26: #{tpu_custom_call.1} parent=1 // pred_check
      %p101 = pneg %p100
    $region27: #{tpu_custom_call.1} parent=1 // pred_check_branch
      %103 = sbr.rel (%p101) target = $region29
    $region28: #{tpu_custom_call.1} parent=1 // pred_region
      %v104 = vlaneseq
      %v105 = vshrl.u32 %v104, 7
      %v106 = vlaneseq
      %v107 = vand.u32 %v106, 127
      %v108 = vmul.u32 %v105, 128
      %v109 = vstv %s81
      %v110 = vadd.s32 %v109, %v108
      %v111 = vadd.s32 %v110, %v107
      %s112 = sld [smem:[#allocation2]]
      %vm113 = vcmp.lt.s32.totalorder %v111, 8
      %v114 = vsel %vm113, %v79, 0.0
      %115 = vadd.xlane.f32.xlu0 %v114
      %v116 = vpop.xlane.xlu0 %115
      %v117 = vrot.slane %v116, 4
      %v118 = vadd.f32 %v116, %v117
      %v119 = vrot.slane %v118, 2
      %v120 = vadd.f32 %v118, %v119
      %v121 = vrot.slane %v120, 1
      %v122 = vadd.f32 %v120, %v121
      %s123 = vtos %v122
      %s124 = sadd.f32 %s112, %s123
      %s125 = scalar_lea.smem [#allocation2], 0
      %126 = sst [smem:[%s125]] %s124
    $region29: #{tpu_custom_call.1} parent=1 // pred_fallthru
      _
    // Predicated region
    $region30: #{tpu_custom_call.1} parent=1 // pred_check
      %p127 = pneg %p48
    $region31: #{tpu_custom_call.1} parent=1 // pred_check_branch
      %129 = sbr.rel (%p127) target = $region33
    $region32: #{tpu_custom_call.1} parent=1 // pred_region
      %s130 = sld [smem:[#allocation2]]
      %s131 = smul.f32 %s130, 0.03125
      %v132 = vstv %s131
      %133 = vst [vmem:[#allocation8] sm:$0xff] %v132
    $region33: #{tpu_custom_call.1} parent=1 // pred_fallthru
      _
    // Predicated region
    $region34: #{tpu_custom_call.1} parent=1 // pred_check
      _
    $region35: #{tpu_custom_call.1} parent=1 // pred_check_branch
      %135 = sbr.rel (0) target = $region37
    $region36: #{tpu_custom_call.1} parent=1 // pred_region
      %137 = vsyncadd [#allocation5], 0
      %s139 = sshll.u32 [#allocation8], 4
      %s140 = int_to_ptr.vmem [resolvable:$true] %s139
      %s141 = sshll.u32 %s2, 4
      %s142 = int_to_ptr.hbm [resolvable:$true] %s141
      %144 = dma.vmem_to_hbm [thread:$0]  %s140, 128, %s142, [#allocation5]
    $region37: #{tpu_custom_call.1} parent=1 // pred_fallthru
      _
    // Predicated region
    $region38: #{tpu_custom_call.1} parent=1 // pred_check
      _
    $region39: #{tpu_custom_call.1} parent=1 // pred_check_branch
      %146 = sbr.rel (0) target = $region41
    $region40: #{tpu_custom_call.1} parent=1 // pred_region
      %148 = dma.done [#allocation5], 128
    $region41: #{tpu_custom_call.1} parent=1 // pred_fallthru
      _
    %149 = vsyncpa [#allocation4], 1
    %150 = vsyncpa [#allocation7], 1
    %151 = vsyncpa [#allocation5], 1

</llo_original>
